<compile_context>
chip_gen: v6e
topology: v6e:2x2x1
jax: 0.10.0
libtpu: 0.0.40
codegen_flags: <defaults>
</compile_context>

<pallas_src>
import jax
import jax.numpy as jnp
from jax.experimental import pallas as pl
from jax.experimental.pallas import tpu as pltpu

_LANES = 128                      # vreg lane width (fast axis)
_SUBLANES = 8                     # f32 sublane count (slow axis)
_SLAB_COLS = 8 * _LANES           # 1024-lane-wide slab: wide unmasked stores
_BLOCK_BYTES = 2 * 1024 * 1024    # ~2 MiB per live buffer (8 live ≈ 16 MiB)


def _identity_miner_kernel(anchor_ref, target_ref, anchor_out_ref, target_out_ref):
    # Pass-through "mining" of the anchor/target tiles.  A concrete miner
    # would replace these copies with its real per-pair compute.
    anchor_out_ref[...] = anchor_ref[...]
    target_out_ref[...] = target_ref[...]


def _slab_geometry(n_elems: int, itemsize: int, block_bytes: int):
    """Pick (rows, cols, tb) so the array folds to [rows, cols] lane-dense
    slabs with cols a wide multiple of 128, tb | rows, and each (tb, cols)
    block ~block_bytes."""
    cols = _SLAB_COLS
    # Row tile: multiple of 8 sublanes sized to ~block_bytes.
    tb = max(_SUBLANES, (block_bytes // (cols * itemsize)) // _SUBLANES * _SUBLANES)
    # Rows needed to hold n_elems, rounded up to a sublane multiple.
    rows0 = pl.cdiv(n_elems, cols)
    rows0 = pl.cdiv(rows0, _SUBLANES) * _SUBLANES
    tb = min(tb, rows0)
    # Pad rows to a multiple of tb so the grid divides exactly (no boundary
    # blocks to reason about).
    rows = pl.cdiv(rows0, tb) * tb
    return rows, cols, tb


def _to_slab(x: jnp.ndarray, rows: int, cols: int) -> jnp.ndarray:
    n = x.size
    flat = x.reshape(-1)
    padded = rows * cols
    if padded != n:
        flat = jnp.pad(flat, (0, padded - n))
    return flat.reshape(rows, cols)


def _base_miner_forward_pallas(anchor, target, *, block_bytes=_BLOCK_BYTES):
    """Pallas identity-miner path (skeleton for fusing real mining compute)."""
    assert anchor.shape == target.shape and anchor.dtype == target.dtype

    n = anchor.size
    itemsize = jnp.dtype(anchor.dtype).itemsize
    rows, cols, tb = _slab_geometry(n, itemsize, block_bytes)

    a2d = _to_slab(anchor, rows, cols)
    t2d = _to_slab(target, rows, cols)

    grid = (rows // tb,)  # exact division by construction
    spec = pl.BlockSpec((tb, cols), lambda i: (i, 0))
    nbytes = 2 * 2 * rows * cols * itemsize  # 2 arrays, read + write each

    anchor_out, target_out = pl.pallas_call(
        _identity_miner_kernel,
        grid=grid,
        in_specs=[spec, spec],
        out_specs=[spec, spec],
        out_shape=(
            jax.ShapeDtypeStruct(a2d.shape, a2d.dtype),
            jax.ShapeDtypeStruct(t2d.shape, t2d.dtype),
        ),
        # Outputs alias the (freshly padded) inputs: no extra HBM buffer when
        # the caller donates under jit; harmless otherwise.
        input_output_aliases={0: 0, 1: 1},
        cost_estimate=pl.CostEstimate(
            flops=0, transcendentals=0, bytes_accessed=nbytes),
        compiler_params=pltpu.CompilerParams(
            dimension_semantics=("parallel",),   # shard row grid across v7x's 2 TCs
            vmem_limit_bytes=32 * 1024 * 1024,   # safe on v7x (64 MiB physical)
        ),
    )(a2d, t2d)

    a_out = anchor_out.reshape(-1)[:n].reshape(anchor.shape)
    t_out = target_out.reshape(-1)[:n].reshape(target.shape)
    return ({"anchor": a_out}, {"target": t_out})


def base_miner_forward(anchor: jnp.ndarray, target: jnp.ndarray, *,
                       use_kernel: bool = False, block_bytes: int = _BLOCK_BYTES):
    """Concrete realization of BaseMiner.forward's contract.

    Default (use_kernel=False): pure pass-through — no kernel launch, no HBM
    traffic (the review's highest-value optimization for an identity stage).
    use_kernel=True runs the Pallas identity kernel, the stage a concrete
    miner would fuse its mining compute into.
    """
    assert anchor.shape == target.shape and anchor.dtype == target.dtype
    if not use_kernel:
        return ({"anchor": anchor}, {"target": target})
    return _base_miner_forward_pallas(anchor, target, block_bytes=block_bytes)


if __name__ == "__main__":
    key = jax.random.PRNGKey(0)
    k_a, k_t = jax.random.split(key)

    # Small demo shape implied by the (anchor, target) embedding signature.
    batch, embed_dim = 8, 32
    anchor = jax.random.normal(k_a, (batch, embed_dim), dtype=jnp.float32)
    target = jax.random.normal(k_t, (batch, embed_dim), dtype=jnp.float32)
    anchor_host = jax.device_get(anchor)
    target_host = jax.device_get(target)

    # 1) Default fast path: no kernel launch, identical semantics.
    fast_a, fast_t = base_miner_forward(anchor, target)
    jax.block_until_ready(fast_a["anchor"])
    assert jnp.allclose(fast_a["anchor"], anchor_host)
    assert jnp.allclose(fast_t["target"], target_host)

    # 2) Pallas kernel path on the same small input (pads 8x32 -> one 8x1024
    #    lane-dense block).
    anchor_dict, target_dict = base_miner_forward(anchor, target, use_kernel=True)
    jax.block_until_ready(anchor_dict["anchor"])
    jax.block_until_ready(target_dict["target"])
    assert anchor_dict["anchor"].shape == (batch, embed_dim)
    assert target_dict["target"].shape == (batch, embed_dim)
    assert jnp.allclose(anchor_dict["anchor"], anchor_host)
    assert jnp.allclose(target_dict["target"], target_host)

    # 3) Kernel path with a multi-step grid (64x1024 f32, block_bytes=64 KiB
    #    -> tb=16 rows -> grid of 4 parallel steps), still small.
    k_a2, k_t2 = jax.random.split(jax.random.PRNGKey(1))
    b2, d2 = 64, 1024
    anchor2 = jax.random.normal(k_a2, (b2, d2), dtype=jnp.float32)
    target2 = jax.random.normal(k_t2, (b2, d2), dtype=jnp.float32)
    a2_host = jax.device_get(anchor2)
    t2_host = jax.device_get(target2)

    anchor_dict2, target_dict2 = base_miner_forward(
        anchor2, target2, use_kernel=True, block_bytes=64 * 1024)
    jax.block_until_ready(anchor_dict2["anchor"])
    jax.block_until_ready(target_dict2["target"])
    assert anchor_dict2["anchor"].shape == (b2, d2)
    assert target_dict2["target"].shape == (b2, d2)
    assert jnp.allclose(anchor_dict2["anchor"], a2_host)
    assert jnp.allclose(target_dict2["target"], t2_host)

    # 4) Oddly-shaped input (last dim not a multiple of 128, total not a
    #    multiple of 1024) now goes through the padded lane-dense path
    #    instead of the removed non-dense fallback.
    k_a3, k_t3 = jax.random.split(jax.random.PRNGKey(2))
    b3, d3 = 13, 37
    anchor3 = jax.random.normal(k_a3, (b3, d3), dtype=jnp.float32)
    target3 = jax.random.normal(k_t3, (b3, d3), dtype=jnp.float32)
    a3_host = jax.device_get(anchor3)
    t3_host = jax.device_get(target3)

    anchor_dict3, target_dict3 = base_miner_forward(anchor3, target3, use_kernel=True)
    jax.block_until_ready(anchor_dict3["anchor"])
    assert anchor_dict3["anchor"].shape == (b3, d3)
    assert jnp.allclose(anchor_dict3["anchor"], a3_host)
    assert jnp.allclose(target_dict3["target"], t3_host)

    print("KERNEL_OK")
</pallas_src>

<mosaic_0001>
module attributes {stable_mosaic.version = 11 : i64} {
  func.func @_identity_miner_kernel(%arg0: i32, %arg1: memref<8x1024xf32, #tpu.memory_space<vmem>>, %arg2: memref<8x1024xf32, #tpu.memory_space<vmem>>, %arg3: memref<8x1024xf32, #tpu.memory_space<vmem>>, %arg4: memref<8x1024xf32, #tpu.memory_space<vmem>>) attributes {dimension_semantics = [#tpu.dimension_semantics<parallel>], iteration_bounds = array<i64: 1>, scalar_prefetch = 0 : i64, scratch_operands = 0 : i64, tpu.core_type = #tpu.core_type<tc>, window_params = [{transform_indices = @transform_0, window_bounds = array<i64: 8, 1024>}, {transform_indices = @transform_1, window_bounds = array<i64: 8, 1024>}, {transform_indices = @transform_2, window_bounds = array<i64: 8, 1024>}, {transform_indices = @transform_3, window_bounds = array<i64: 8, 1024>}]} {
    %c0 = arith.constant 0 : index
    %c0_0 = arith.constant 0 : index
    %0 = vector.load %arg1[%c0, %c0_0] : memref<8x1024xf32, #tpu.memory_space<vmem>>, vector<8x1024xf32>
    %c0_1 = arith.constant 0 : index
    %c0_2 = arith.constant 0 : index
    %1 = vector.load %arg3[%c0_1, %c0_2] : memref<8x1024xf32, #tpu.memory_space<vmem>>, vector<8x1024xf32>
    tpu.vector_store %arg3[%c0_1, %c0_2], %0 {strides = array<i32>} : memref<8x1024xf32, #tpu.memory_space<vmem>>, vector<8x1024xf32>,
    %c0_3 = arith.constant 0 : index
    %c0_4 = arith.constant 0 : index
    %2 = vector.load %arg2[%c0_3, %c0_4] : memref<8x1024xf32, #tpu.memory_space<vmem>>, vector<8x1024xf32>
    %c0_5 = arith.constant 0 : index
    %c0_6 = arith.constant 0 : index
    %3 = vector.load %arg4[%c0_5, %c0_6] : memref<8x1024xf32, #tpu.memory_space<vmem>>, vector<8x1024xf32>
    tpu.vector_store %arg4[%c0_5, %c0_6], %2 {strides = array<i32>} : memref<8x1024xf32, #tpu.memory_space<vmem>>, vector<8x1024xf32>,
    return
  }
  func.func @transform_0(%arg0: i32) -> (i32, i32) {
    %c0_i32 = arith.constant 0 : i32
    %c0_i32_0 = arith.constant 0 : i32
    return %arg0, %c0_i32 : i32, i32
  }
  func.func @transform_1(%arg0: i32) -> (i32, i32) {
    %c0_i32 = arith.constant 0 : i32
    %c0_i32_0 = arith.constant 0 : i32
    return %arg0, %c0_i32 : i32, i32
  }
  func.func @transform_2(%arg0: i32) -> (i32, i32) {
    %c0_i32 = arith.constant 0 : i32
    %c0_i32_0 = arith.constant 0 : i32
    return %arg0, %c0_i32 : i32, i32
  }
  func.func @transform_3(%arg0: i32) -> (i32, i32) {
    %c0_i32 = arith.constant 0 : i32
    %c0_i32_0 = arith.constant 0 : i32
    return %arg0, %c0_i32 : i32, i32
  }
}

</mosaic_0001>

<llo_original>
// kernel: tpu_custom_call.1
$region0: #{tpu_custom_call.1}
  #allocation0 [shape = 'u32[]', space=smem, size = 0x4, offset = 0x4, fixed_abs, tag = 'smem constant byte address 0x4 - core index']
  #allocation1 [shape = 'u32[144,128]{1,0:T(1,128)}', space=vmem, size = 0x12000, scoped, tag = 'internal scratch']
  %s0 = inlined_call_operand.hbm [shape: f32[8,1024], index: 0, kind: input, shape index: {}, may-alias: {0,2}]
  %s1 = inlined_call_operand.hbm [shape: f32[8,1024], index: 1, kind: input, shape index: {}, may-alias: {1,3}]
  %s2 = inlined_call_operand.hbm [shape: f32[8,1024], index: 2, kind: output, shape index: {0}, may-alias: {0,2}]
  %s3 = inlined_call_operand.hbm [shape: f32[8,1024], index: 3, kind: output, shape index: {1}, may-alias: {1,3}]
  %4 = xla_tuple %s2, %s3
  %s5 = sld [smem:[#allocation0]]
  $region34: #{tpu_custom_call.1} parent=0
    _
  %s7 = ssub.s32 1, %s5
  %s8 = scalar_select 0, %s7, %s5
  $region1: #{tpu_custom_call.1} parent=0
    #allocation2 [shape = 'u8[32768]{0}', space=vmem, size = 0x8000, scoped, tag = 'input window, operand 0, single buffered']
    #allocation3 [shape = 's32[1]{0}', space=sflag, size = 0x4, scoped, tag = 'scoped memory for tpu_custom_call.1']
    #allocation4 [shape = 's32[1]{0}', space=sflag, size = 0x4, scoped, tag = 'scoped memory for tpu_custom_call.1']
    #allocation5 [shape = 'u8[32768]{0}', space=vmem, size = 0x8000, scoped, tag = 'input window, operand 1, single buffered']
    #allocation6 [shape = 's32[1]{0}', space=sflag, size = 0x4, scoped, tag = 'scoped memory for tpu_custom_call.1']
    #allocation7 [shape = 'u8[32768]{0}', space=vmem, size = 0x8000, scoped, tag = 'output window, operand 0, single buffered']
    #allocation8 [shape = 'u8[32768]{0}', space=vmem, size = 0x8000, scoped, tag = 'output window, operand 1, single buffered']
    #allocation9 [shape = 's32[1]{0}', space=sflag, size = 0x4, scoped, tag = 'scoped memory for tpu_custom_call.1']
    %9 = vsyncpa [#allocation3], 0
    %10 = vsyncpa [#allocation6], 0
    %11 = vsyncpa [#allocation4], 0
    %12 = vsyncpa [#allocation9], 0
    // Predicated region
    $region2: #{tpu_custom_call.1} parent=1 // pred_check
      _
    $region3: #{tpu_custom_call.1} parent=1 // pred_check_branch
      %14 = sbr.rel (0) target = $region5
    $region4: #{tpu_custom_call.1} parent=1 // pred_region
      %s16 = ssub.s32 1024, 1024
      %17 = vsyncadd [#allocation3], %s16
      %s19 = sshll.u32 [#allocation2], 4
      %s20 = int_to_ptr.vmem [resolvable:$true] %s19
      %22 = dma.hbm_to_vmem [thread:$0]  %s0, 1024, %s20, [#allocation3]
    $region5: #{tpu_custom_call.1} parent=1 // pred_fallthru
      _
    // Predicated region
    $region6: #{tpu_custom_call.1} parent=1 // pred_check
      _
    $region7: #{tpu_custom_call.1} parent=1 // pred_check_branch
      %24 = sbr.rel (0) target = $region9
    $region8: #{tpu_custom_call.1} parent=1 // pred_region
      %s26 = ssub.s32 1024, 1024
      %27 = vsyncadd [#allocation6], %s26
      %s29 = sshll.u32 [#allocation5], 4
      %s30 = int_to_ptr.vmem [resolvable:$true] %s29
      %32 = dma.hbm_to_vmem [thread:$0]  %s1, 1024, %s30, [#allocation6]
    $region9: #{tpu_custom_call.1} parent=1 // pred_fallthru
      _
    // Predicated region
    $region10: #{tpu_custom_call.1} parent=1 // pred_check
      _
    $region11: #{tpu_custom_call.1} parent=1 // pred_check_branch
      %34 = sbr.rel (0) target = $region13
    $region12: #{tpu_custom_call.1} parent=1 // pred_region
      %35 = dma.done [#allocation3], 1024
    $region13: #{tpu_custom_call.1} parent=1 // pred_fallthru
      _
    // Predicated region
    $region14: #{tpu_custom_call.1} parent=1 // pred_check
      _
    $region15: #{tpu_custom_call.1} parent=1 // pred_check_branch
      %37 = sbr.rel (0) target = $region17
    $region16: #{tpu_custom_call.1} parent=1 // pred_region
      %38 = dma.done [#allocation6], 1024
    $region17: #{tpu_custom_call.1} parent=1 // pred_fallthru
      _
    %v39 = vld [vmem:[#allocation2] sm:$0xff]
    %v40 = vld [vmem:[#allocation2 + $0x8] sm:$0xff]
    %v41 = vld [vmem:[#allocation2 + $0x10] sm:$0xff]
    %v42 = vld [vmem:[#allocation2 + $0x18] sm:$0xff]
    %v43 = vld [vmem:[#allocation2 + $0x20] sm:$0xff]
    %v44 = vld [vmem:[#allocation2 + $0x28] sm:$0xff]
    %v45 = vld [vmem:[#allocation2 + $0x30] sm:$0xff]
    %v46 = vld [vmem:[#allocation2 + $0x38] sm:$0xff]
    %47 = vst [vmem:[#allocation7] sm:$0xff] %v39
    %48 = vst [vmem:[#allocation7 + $0x8] sm:$0xff] %v40
    %49 = vst [vmem:[#allocation7 + $0x10] sm:$0xff] %v41
    %50 = vst [vmem:[#allocation7 + $0x18] sm:$0xff] %v42
    %51 = vst [vmem:[#allocation7 + $0x20] sm:$0xff] %v43
    %52 = vst [vmem:[#allocation7 + $0x28] sm:$0xff] %v44
    %53 = vst [vmem:[#allocation7 + $0x30] sm:$0xff] %v45
    %54 = vst [vmem:[#allocation7 + $0x38] sm:$0xff] %v46
    %v55 = vld [vmem:[#allocation5] sm:$0xff]
    %v56 = vld [vmem:[#allocation5 + $0x8] sm:$0xff]
    %v57 = vld [vmem:[#allocation5 + $0x10] sm:$0xff]
    %v58 = vld [vmem:[#allocation5 + $0x18] sm:$0xff]
    %v59 = vld [vmem:[#allocation5 + $0x20] sm:$0xff]
    %v60 = vld [vmem:[#allocation5 + $0x28] sm:$0xff]
    %v61 = vld [vmem:[#allocation5 + $0x30] sm:$0xff]
    %v62 = vld [vmem:[#allocation5 + $0x38] sm:$0xff]
    %63 = vst [vmem:[#allocation8] sm:$0xff] %v55
    %64 = vst [vmem:[#allocation8 + $0x8] sm:$0xff] %v56
    %65 = vst [vmem:[#allocation8 + $0x10] sm:$0xff] %v57
    %66 = vst [vmem:[#allocation8 + $0x18] sm:$0xff] %v58
    %67 = vst [vmem:[#allocation8 + $0x20] sm:$0xff] %v59
    %68 = vst [vmem:[#allocation8 + $0x28] sm:$0xff] %v60
    %69 = vst [vmem:[#allocation8 + $0x30] sm:$0xff] %v61
    %70 = vst [vmem:[#allocation8 + $0x38] sm:$0xff] %v62
    // Predicated region
    $region18: #{tpu_custom_call.1} parent=1 // pred_check
      _
    $region19: #{tpu_custom_call.1} parent=1 // pred_check_branch
      %72 = sbr.rel (0) target = $region21
    $region20: #{tpu_custom_call.1} parent=1 // pred_region
      %s74 = ssub.s32 1024, 1024
      %75 = vsyncadd [#allocation4], %s74
      %s77 = sshll.u32 [#allocation7], 4
      %s78 = int_to_ptr.vmem [resolvable:$true] %s77
      %80 = dma.vmem_to_hbm [thread:$0]  %s78, 1024, %s2, [#allocation4]
    $region21: #{tpu_custom_call.1} parent=1 // pred_fallthru
      _
    // Predicated region
    $region22: #{tpu_custom_call.1} parent=1 // pred_check
      _
    $region23: #{tpu_custom_call.1} parent=1 // pred_check_branch
      %82 = sbr.rel (0) target = $region25
    $region24: #{tpu_custom_call.1} parent=1 // pred_region
      %s84 = ssub.s32 1024, 1024
      %85 = vsyncadd [#allocation9], %s84
      %s87 = sshll.u32 [#allocation8], 4
      %s88 = int_to_ptr.vmem [resolvable:$true] %s87
      %90 = dma.vmem_to_hbm [thread:$0]  %s88, 1024, %s3, [#allocation9]
    $region25: #{tpu_custom_call.1} parent=1 // pred_fallthru
      _
    // Predicated region
    $region26: #{tpu_custom_call.1} parent=1 // pred_check
      _
    $region27: #{tpu_custom_call.1} parent=1 // pred_check_branch
      %92 = sbr.rel (0) target = $region29
    $region28: #{tpu_custom_call.1} parent=1 // pred_region
      %93 = dma.done [#allocation4], 1024
    $region29: #{tpu_custom_call.1} parent=1 // pred_fallthru
      _
    // Predicated region
    $region30: #{tpu_custom_call.1} parent=1 // pred_check
      _
    $region31: #{tpu_custom_call.1} parent=1 // pred_check_branch
      %95 = sbr.rel (0) target = $region33
    $region32: #{tpu_custom_call.1} parent=1 // pred_region
      %96 = dma.done [#allocation9], 1024
    $region33: #{tpu_custom_call.1} parent=1 // pred_fallthru
      _
    %97 = vsyncpa [#allocation3], 1
    %98 = vsyncpa [#allocation6], 1
    %99 = vsyncpa [#allocation4], 1
    %100 = vsyncpa [#allocation9], 1

</llo_original>
